<compile_context>
chip_gen: v7x
topology: tpu7x:2x2x1
jax: 0.10.0
libtpu: 0.0.40
codegen_flags: <defaults>
</compile_context>

<pallas_src>
import functools

import jax
import jax.numpy as jnp
from jax import lax
from jax.experimental import pallas as pl
from jax.experimental.pallas import tpu as pltpu

LANE = 128


# ----------------------------------------------------------------------------
# Hardware-aware budgets
# ----------------------------------------------------------------------------
def _tpu_vmem_bytes():
    """Physical VMEM capacity; conservative 64 MiB (v7x) if the query fails."""
    try:
        info = pltpu.get_tpu_info()
        cap = getattr(info, "vmem_capacity_bytes", None)
        if cap:
            return int(cap)
    except Exception:
        pass
    return 64 << 20


def _largest_divisor_leq(n, cap):
    cap = int(max(1, min(n, cap)))
    for d in range(cap, 0, -1):
        if n % d == 0:
            return d
    return 1


# ----------------------------------------------------------------------------
# Single-pass kernel: pool + conv + sigmoid + rescale, Bt batch slabs per step.
# ----------------------------------------------------------------------------
def _fused_kernel(w_ref, x_ref, o_ref, pbuf, *, inv_hw, k, pad, side):
    # w_ref : SMEM (K,) f32 conv taps
    # x_ref : VMEM (Bt, C, HW)   o_ref : VMEM (Bt, C, HW)
    # pbuf  : VMEM (2*side + C, 1) f32 scratch (zero-padded pooled vector)
    bt, C, _ = x_ref.shape

    # AdaptiveAvgPool2d(1): f32 accumulation straight off the block.
    s = jnp.sum(x_ref[...], axis=-1, keepdims=True, dtype=jnp.float32)  # (Bt,C,1)

    pbuf[...] = jnp.zeros_like(pbuf)          # boundary zeros stay valid below
    for b in range(bt):                       # static, tiny per-row gate math
        pbuf[pl.ds(side, C), :] = s[b] * inv_hw          # true-HW mean, (C, 1)

        # Conv1d over channels as K sublane-shifted reads of the padded vector.
        y = w_ref[0] * pbuf[pl.ds(side - pad, C), :]
        for j in range(1, k):
            y = y + w_ref[j] * pbuf[pl.ds(side - pad + j, C), :]

        gate = jax.nn.sigmoid(y)                          # (C, 1) f32

        # f32 multiply, cast on store (bf16 inputs stay close to f32 ref).
        o_ref[b] = (x_ref[b] * gate).astype(o_ref.dtype)


def _single_pass(x_flat, w, k, pad, budget, cap, alias_input):
    B, C, HW = x_flat.shape
    itemsize = jnp.dtype(x_flat.dtype).itemsize
    slab_bytes = C * HW * itemsize

    # Batch-block tiny slabs to amortize per-grid-step overhead.
    bt_cap = max(1, min(64, budget // max(1, slab_bytes), B))
    bt = _largest_divisor_leq(B, bt_cap)
    nb = B // bt
    block_bytes = bt * slab_bytes

    side = max(8, -(-pad // 8) * 8)           # sublane-aligned scratch offset
    kern = functools.partial(
        _fused_kernel, inv_hw=1.0 / float(HW), k=k, pad=pad, side=side)

    cost = pl.CostEstimate(
        flops=int(3 * B * C * HW),
        transcendentals=int(B * C),
        bytes_accessed=int(2 * B * C * HW * itemsize),
    )
    # 2x double-buffered input + 2x output blocks, capped below physical VMEM.
    vmem_limit = int(min(cap - (6 << 20),
                         max(32 << 20, 4 * block_bytes + (4 << 20))))
    return pl.pallas_call(
        kern,
        out_shape=jax.ShapeDtypeStruct((B, C, HW), x_flat.dtype),
        grid=(nb,),
        in_specs=[
            pl.BlockSpec(memory_space=pltpu.MemorySpace.SMEM),   # (K,) weights
            pl.BlockSpec((bt, C, HW), lambda i: (i, 0, 0)),      # x slabs
        ],
        out_specs=pl.BlockSpec((bt, C, HW), lambda i: (i, 0, 0)),
        scratch_shapes=[pltpu.VMEM((2 * side + C, 1), jnp.float32)],
        input_output_aliases=({1: 0} if alias_input else {}),
        compiler_params=pltpu.CompilerParams(
            dimension_semantics=("parallel",),
            vmem_limit_bytes=vmem_limit,
        ),
        cost_estimate=cost,
    )(w, x_flat)


# ----------------------------------------------------------------------------
# Tiled two-phase fallback: pool+gate kernel, then scale kernel (3 HBM passes).
# ----------------------------------------------------------------------------
def _pool_gate_kernel(w_ref, x_ref, g_ref, pbuf, *, inv_hw, k, pad, side, hw):
    # w_ref: SMEM (K,) f32; x_ref: (1, C, tile); g_ref: (1, C, 1) f32 (resident
    # accumulator across the tile axis, finalized into the gate on last tile).
    t = pl.program_id(1)
    C = x_ref.shape[1]
    tile = x_ref.shape[2]

    @pl.when(t == 0)
    def _():
        g_ref[...] = jnp.zeros_like(g_ref)

    xb = x_ref[...]
    if hw % tile != 0:
        # Mask the ragged last tile (no full-tensor jnp.pad on the host side).
        rem = hw - t * tile
        lane = lax.broadcasted_iota(jnp.int32, xb.shape, 2)
        xb = jnp.where(lane < rem, xb, jnp.zeros_like(xb))
    g_ref[...] += jnp.sum(xb, axis=-1, keepdims=True, dtype=jnp.float32)

    @pl.when(t == pl.num_programs(1) - 1)
    def _():
        pbuf[...] = jnp.zeros_like(pbuf)
        pbuf[pl.ds(side, C), :] = g_ref[0] * inv_hw       # true-HW mean
        y = w_ref[0] * pbuf[pl.ds(side - pad, C), :]
        for j in range(1, k):
            y = y + w_ref[j] * pbuf[pl.ds(side - pad + j, C), :]
        g_ref[...] = jax.nn.sigmoid(y)[None]              # (1, C, 1) f32 gate


def _scale_kernel(g_ref, x_ref, o_ref):
    # f32 gate, f32 multiply, cast on the store.
    o_ref[...] = (x_ref[...] * g_ref[...]).astype(o_ref.dtype)


def _choose_tile(hw, c, itemsize, target_bytes):
    """Lane-multiple tile sized by bytes (~1-4 MiB blocks), capped near HW."""
    row_bytes = max(1, c * itemsize)
    t = (int(target_bytes) // row_bytes) // LANE * LANE
    t = max(LANE, t)
    hw_up = -(-hw // LANE) * LANE
    return int(min(t, hw_up))


def _pool_gate(w, x_flat, tile, k, pad, cap):
    B, C, HW = x_flat.shape
    n_t = pl.cdiv(HW, tile)
    side = max(8, -(-pad // 8) * 8)
    itemsize = jnp.dtype(x_flat.dtype).itemsize
    block_bytes = C * tile * itemsize
    kern = functools.partial(
        _pool_gate_kernel, inv_hw=1.0 / float(HW), k=k, pad=pad, side=side,
        hw=HW)
    cost = pl.CostEstimate(
        flops=int(B * C * HW + 3 * B * C * k), transcendentals=int(B * C),
        bytes_accessed=int(B * C * HW * itemsize + B * C * 4))
    return pl.pallas_call(
        kern,
        out_shape=jax.ShapeDtypeStruct((B, C, 1), jnp.float32),
        grid=(B, n_t),
        in_specs=[
            pl.BlockSpec(memory_space=pltpu.MemorySpace.SMEM),       # weights
            pl.BlockSpec((1, C, tile), lambda b, t: (b, 0, t)),      # x tile
        ],
        out_specs=pl.BlockSpec((1, C, 1), lambda b, t: (b, 0, 0)),
        scratch_shapes=[pltpu.VMEM((2 * side + C, 1), jnp.float32)],
        compiler_params=pltpu.CompilerParams(
            dimension_semantics=("parallel", "arbitrary"),
            vmem_limit_bytes=int(min(cap - (6 << 20),
                                     max(32 << 20, 2 * block_bytes + (8 << 20)))),
        ),
        cost_estimate=cost,
    )(w, x_flat)


def _scale(x_flat, gate, tile, cap):
    B, C, HW = x_flat.shape
    n_t = pl.cdiv(HW, tile)
    itemsize = jnp.dtype(x_flat.dtype).itemsize
    block_bytes = C * tile * itemsize
    cost = pl.CostEstimate(
        flops=int(B * C * HW), transcendentals=0,
        bytes_accessed=int(2 * B * C * HW * itemsize + B * C * 4))
    return pl.pallas_call(
        _scale_kernel,
        out_shape=jax.ShapeDtypeStruct((B, C, HW), x_flat.dtype),
        grid=(B, n_t),
        in_specs=[
            pl.BlockSpec((1, C, 1), lambda b, t: (b, 0, 0)),         # gate
            pl.BlockSpec((1, C, tile), lambda b, t: (b, 0, t)),      # x tile
        ],
        out_specs=pl.BlockSpec((1, C, tile), lambda b, t: (b, 0, t)),
        compiler_params=pltpu.CompilerParams(
            # both axes parallel: lets v7x's 2 TensorCores split the streaming
            dimension_semantics=("parallel", "parallel"),
            vmem_limit_bytes=int(min(cap - (6 << 20),
                                     max(32 << 20, 4 * block_bytes + (8 << 20)))),
        ),
        cost_estimate=cost,
    )(gate, x_flat)


# ----------------------------------------------------------------------------
# Public wrapper
# ----------------------------------------------------------------------------
def neighbor_fusion(x, conv_weight, *, vmem_slab_budget_bytes=None,
                    fallback_tile_bytes=2 << 20, alias_input=False):
    """x: (B, C, H, W).  conv_weight: (1, 1, K) as in nn.Conv1d."""
    B, C, H, W = x.shape
    HW = H * W
    K = int(conv_weight.shape[-1])
    pad = (K - 1) // 2
    w = conv_weight.reshape(K).astype(jnp.float32)
    itemsize = jnp.dtype(x.dtype).itemsize

    x_flat = x.reshape(B, C, HW)
    slab_bytes = C * HW * itemsize

    cap = _tpu_vmem_bytes()
    if vmem_slab_budget_bytes is None:
        # 2x double-buffered in + 2x out slabs must fit physical VMEM w/ headroom.
        budget = max(4 << 20, (cap - (8 << 20)) // 4)
    else:
        budget = int(vmem_slab_budget_bytes)

    if slab_bytes <= budget:
        # Single-pass, slab-resident: read x twice, write once (2x HBM traffic).
        out_flat = _single_pass(x_flat, w, K, pad, budget, cap, alias_input)
        return out_flat.reshape(B, C, H, W)

    # Tiled two-phase path (slab does not fit VMEM): exactly 3 HBM passes.
    tile = _choose_tile(HW, C, itemsize, fallback_tile_bytes)
    gate = _pool_gate(w, x_flat, tile, K, pad, cap)        # (B, C, 1) f32
    out_flat = _scale(x_flat, gate, tile, cap)
    return out_flat.reshape(B, C, H, W)


def neighbor_fusion_ref(x, conv_weight):
    """Pure-JAX reference matching the PyTorch module."""
    K = conv_weight.shape[-1]
    pad = (K - 1) // 2
    pooled = jnp.mean(x, axis=(2, 3))                      # (B, C)
    padded = jnp.pad(pooled, ((0, 0), (pad, pad)))         # (B, C + 2*pad)
    w = conv_weight.reshape(K)
    y = sum(w[j] * padded[:, j:j + pooled.shape[1]] for j in range(K))
    gate = jax.nn.sigmoid(y)                               # (B, C)
    return x * gate[:, :, None, None]


if __name__ == "__main__":
    key = jax.random.PRNGKey(0)
    kx, kw = jax.random.split(key)

    kernel_size = 3
    bound = 1.0 / (1 * kernel_size) ** 0.5
    conv_weight = jax.random.uniform(
        kw, (1, 1, kernel_size), minval=-bound, maxval=bound,
        dtype=jnp.float32)

    # (shape, dtype, kwargs, tol): exercise single-pass (aligned / unaligned HW
    # / C not multiple of 8 / batch-blocked / bf16) and the tiled fallback
    # (exact tiles and a masked ragged last tile).
    cases = [
        ((2, 4, 16, 16), jnp.float32, {}, 1e-5),
        ((1, 8, 7, 7), jnp.float32, {}, 1e-5),
        ((2, 6, 7, 7), jnp.float32, {}, 1e-5),
        ((8, 4, 8, 8), jnp.float32, {}, 1e-5),
        ((2, 8, 7, 7), jnp.bfloat16, {}, 3e-2),
        ((2, 4, 16, 16), jnp.float32,
         dict(vmem_slab_budget_bytes=1024, fallback_tile_bytes=512), 1e-5),
        ((2, 8, 20, 20), jnp.float32,
         dict(vmem_slab_budget_bytes=1024, fallback_tile_bytes=4096), 1e-5),
    ]
    for shape, dtype, kwargs, tol in cases:
        kxi, kx = jax.random.split(kx)
        x = jax.random.normal(kxi, shape, dtype=dtype)
        ref = neighbor_fusion_ref(x.astype(jnp.float32), conv_weight)
        out = jax.block_until_ready(neighbor_fusion(x, conv_weight, **kwargs))
        assert out.shape == x.shape
        assert jnp.allclose(out.astype(jnp.float32), ref, atol=tol, rtol=tol), \
            f"mismatch vs reference for shape {shape} dtype {dtype}"

    # input_output_aliases + donation: output reuses x's HBM buffer.
    kxi, kx = jax.random.split(kx)
    x = jax.random.normal(kxi, (2, 4, 16, 16), dtype=jnp.float32)
    ref = neighbor_fusion_ref(x, conv_weight)
    fused_donating = jax.jit(
        lambda xx, ww: neighbor_fusion(xx, ww, alias_input=True),
        donate_argnums=(0,))
    out = jax.block_until_ready(fused_donating(x, conv_weight))
    assert out.shape == ref.shape
    assert jnp.allclose(out, ref, atol=1e-5, rtol=1e-5), "mismatch (aliased path)"

    print("KERNEL_OK")
</pallas_src>

<mosaic_0001>
module attributes {stable_mosaic.version = 11 : i64} {
  func.func @_fused_kernel(%arg0: i32, %arg1: memref<3xf32, #tpu.memory_space<smem>>, %arg2: memref<2x4x256xf32, #tpu.memory_space<vmem>>, %arg3: memref<2x4x256xf32, #tpu.memory_space<vmem>>, %arg4: memref<20x1xf32, #tpu.memory_space<vmem>>) attributes {dimension_semantics = [#tpu.dimension_semantics<parallel>], iteration_bounds = array<i64: 1>, scalar_prefetch = 0 : i64, scratch_operands = 1 : i64, tpu.core_type = #tpu.core_type<tc>, window_params = [{transform_indices = @transform_0, window_bounds = array<i64: 3>}, {transform_indices = @transform_1, window_bounds = array<i64: 2, 4, 256>}, {transform_indices = @transform_2, window_bounds = array<i64: 2, 4, 256>}]} {
    %c0 = arith.constant 0 : index
    %c0_0 = arith.constant 0 : index
    %c0_1 = arith.constant 0 : index
    %0 = vector.load %arg2[%c0, %c0_0, %c0_1] : memref<2x4x256xf32, #tpu.memory_space<vmem>>, vector<2x4x256xf32>
    %cst = arith.constant dense<0.000000e+00> : vector<2x4xf32>
    %1 = vector.multi_reduction <add>, %0, %cst [2] : vector<2x4x256xf32> to vector<2x4xf32>
    %2 = vector.shape_cast %1 : vector<2x4xf32> to vector<2x4x1xf32>
    %cst_2 = arith.constant 0.000000e+00 : f32
    %3 = vector.broadcast %cst_2 : f32 to vector<20x1xf32>
    %c0_3 = arith.constant 0 : index
    %c0_4 = arith.constant 0 : index
    %4 = vector.load %arg4[%c0_3, %c0_4] : memref<20x1xf32, #tpu.memory_space<vmem>>, vector<20x1xf32>
    tpu.vector_store %arg4[%c0_3, %c0_4], %3 {strides = array<i32>} : memref<20x1xf32, #tpu.memory_space<vmem>>, vector<20x1xf32>,
    %5 = vector.extract_strided_slice %2 {offsets = [0, 0, 0], sizes = [1, 4, 1], strides = [1, 1, 1]} : vector<2x4x1xf32> to vector<1x4x1xf32>
    %6 = vector.shape_cast %5 : vector<1x4x1xf32> to vector<4x1xf32>
    %cst_5 = arith.constant 3.906250e-03 : f32
    %7 = vector.broadcast %cst_5 : f32 to vector<4x1xf32>
    %8 = arith.mulf %6, %7 : vector<4x1xf32>
    %c8 = arith.constant 8 : index
    %c0_6 = arith.constant 0 : index
    %9 = vector.load %arg4[%c8, %c0_6] : memref<20x1xf32, #tpu.memory_space<vmem>>, vector<4x1xf32>
    tpu.vector_store %arg4[%c8, %c0_6], %8 {strides = array<i32>} : memref<20x1xf32, #tpu.memory_space<vmem>>, vector<4x1xf32>,
    %c0_7 = arith.constant 0 : index
    %10 = memref.load %arg1[%c0_7] : memref<3xf32, #tpu.memory_space<smem>>
    %c7 = arith.constant 7 : index
    %c0_8 = arith.constant 0 : index
    %11 = vector.load %arg4[%c7, %c0_8] : memref<20x1xf32, #tpu.memory_space<vmem>>, vector<4x1xf32>
    %12 = vector.broadcast %10 : f32 to vector<4x1xf32>
    %13 = arith.mulf %12, %11 : vector<4x1xf32>
    %c1 = arith.constant 1 : index
    %14 = memref.load %arg1[%c1] : memref<3xf32, #tpu.memory_space<smem>>
    %c8_9 = arith.constant 8 : index
    %c0_10 = arith.constant 0 : index
    %15 = vector.load %arg4[%c8_9, %c0_10] : memref<20x1xf32, #tpu.memory_space<vmem>>, vector<4x1xf32>
    %16 = vector.broadcast %14 : f32 to vector<4x1xf32>
    %17 = arith.mulf %16, %15 : vector<4x1xf32>
    %18 = arith.addf %13, %17 : vector<4x1xf32>
    %c2 = arith.constant 2 : index
    %19 = memref.load %arg1[%c2] : memref<3xf32, #tpu.memory_space<smem>>
    %c9 = arith.constant 9 : index
    %c0_11 = arith.constant 0 : index
    %20 = vector.load %arg4[%c9, %c0_11] : memref<20x1xf32, #tpu.memory_space<vmem>>, vector<4x1xf32>
    %21 = vector.broadcast %19 : f32 to vector<4x1xf32>
    %22 = arith.mulf %21, %20 : vector<4x1xf32>
    %23 = arith.addf %18, %22 : vector<4x1xf32>
    %24 = arith.negf %23 : vector<4x1xf32>
    %25 = math.exp %24 : vector<4x1xf32>
    %cst_12 = arith.constant 1.000000e+00 : f32
    %26 = vector.broadcast %cst_12 : f32 to vector<4x1xf32>
    %27 = arith.addf %26, %25 : vector<4x1xf32>
    %28 = arith.divf %26, %27 : vector<4x1xf32>
    %c0_13 = arith.constant 0 : index
    %c0_14 = arith.constant 0 : index
    %c0_15 = arith.constant 0 : index
    %29 = vector.load %arg2[%c0_13, %c0_14, %c0_15] : memref<2x4x256xf32, #tpu.memory_space<vmem>>, vector<1x4x256xf32>
    %30 = vector.shape_cast %29 : vector<1x4x256xf32> to vector<4x256xf32>
    %31 = vector.broadcast %28 : vector<4x1xf32> to vector<4x256xf32>
    %32 = arith.mulf %30, %31 : vector<4x256xf32>
    %c0_16 = arith.constant 0 : index
    %c0_17 = arith.constant 0 : index
    %c0_18 = arith.constant 0 : index
    %33 = vector.load %arg3[%c0_16, %c0_17, %c0_18] : memref<2x4x256xf32, #tpu.memory_space<vmem>>, vector<1x4x256xf32>
    %34 = vector.shape_cast %33 : vector<1x4x256xf32> to vector<4x256xf32>
    %35 = vector.shape_cast %32 : vector<4x256xf32> to vector<1x4x256xf32>
    tpu.vector_store %arg3[%c0_16, %c0_17, %c0_18], %35 {strides = array<i32>} : memref<2x4x256xf32, #tpu.memory_space<vmem>>, vector<1x4x256xf32>,
    %36 = vector.extract_strided_slice %2 {offsets = [1, 0, 0], sizes = [1, 4, 1], strides = [1, 1, 1]} : vector<2x4x1xf32> to vector<1x4x1xf32>
    %37 = vector.shape_cast %36 : vector<1x4x1xf32> to vector<4x1xf32>
    %cst_19 = arith.constant 3.906250e-03 : f32
    %38 = vector.broadcast %cst_19 : f32 to vector<4x1xf32>
    %39 = arith.mulf %37, %38 : vector<4x1xf32>
    %c8_20 = arith.constant 8 : index
    %c0_21 = arith.constant 0 : index
    %40 = vector.load %arg4[%c8_20, %c0_21] : memref<20x1xf32, #tpu.memory_space<vmem>>, vector<4x1xf32>
    tpu.vector_store %arg4[%c8_20, %c0_21], %39 {strides = array<i32>} : memref<20x1xf32, #tpu.memory_space<vmem>>, vector<4x1xf32>,
    %c0_22 = arith.constant 0 : index
    %41 = memref.load %arg1[%c0_22] : memref<3xf32, #tpu.memory_space<smem>>
    %c7_23 = arith.constant 7 : index
    %c0_24 = arith.constant 0 : index
    %42 = vector.load %arg4[%c7_23, %c0_24] : memref<20x1xf32, #tpu.memory_space<vmem>>, vector<4x1xf32>
    %43 = vector.broadcast %41 : f32 to vector<4x1xf32>
    %44 = arith.mulf %43, %42 : vector<4x1xf32>
    %c1_25 = arith.constant 1 : index
    %45 = memref.load %arg1[%c1_25] : memref<3xf32, #tpu.memory_space<smem>>
    %c8_26 = arith.constant 8 : index
    %c0_27 = arith.constant 0 : index
    %46 = vector.load %arg4[%c8_26, %c0_27] : memref<20x1xf32, #tpu.memory_space<vmem>>, vector<4x1xf32>
    %47 = vector.broadcast %45 : f32 to vector<4x1xf32>
    %48 = arith.mulf %47, %46 : vector<4x1xf32>
    %49 = arith.addf %44, %48 : vector<4x1xf32>
    %c2_28 = arith.constant 2 : index
    %50 = memref.load %arg1[%c2_28] : memref<3xf32, #tpu.memory_space<smem>>
    %c9_29 = arith.constant 9 : index
    %c0_30 = arith.constant 0 : index
    %51 = vector.load %arg4[%c9_29, %c0_30] : memref<20x1xf32, #tpu.memory_space<vmem>>, vector<4x1xf32>
    %52 = vector.broadcast %50 : f32 to vector<4x1xf32>
    %53 = arith.mulf %52, %51 : vector<4x1xf32>
    %54 = arith.addf %49, %53 : vector<4x1xf32>
    %55 = arith.negf %54 : vector<4x1xf32>
    %56 = math.exp %55 : vector<4x1xf32>
    %cst_31 = arith.constant 1.000000e+00 : f32
    %57 = vector.broadcast %cst_31 : f32 to vector<4x1xf32>
    %58 = arith.addf %57, %56 : vector<4x1xf32>
    %59 = arith.divf %57, %58 : vector<4x1xf32>
    %c1_32 = arith.constant 1 : index
    %c0_33 = arith.constant 0 : index
    %c0_34 = arith.constant 0 : index
    %60 = vector.load %arg2[%c1_32, %c0_33, %c0_34] : memref<2x4x256xf32, #tpu.memory_space<vmem>>, vector<1x4x256xf32>
    %61 = vector.shape_cast %60 : vector<1x4x256xf32> to vector<4x256xf32>
    %62 = vector.broadcast %59 : vector<4x1xf32> to vector<4x256xf32>
    %63 = arith.mulf %61, %62 : vector<4x256xf32>
    %c1_35 = arith.constant 1 : index
    %c0_36 = arith.constant 0 : index
    %c0_37 = arith.constant 0 : index
    %64 = vector.load %arg3[%c1_35, %c0_36, %c0_37] : memref<2x4x256xf32, #tpu.memory_space<vmem>>, vector<1x4x256xf32>
    %65 = vector.shape_cast %64 : vector<1x4x256xf32> to vector<4x256xf32>
    %66 = vector.shape_cast %63 : vector<4x256xf32> to vector<1x4x256xf32>
    tpu.vector_store %arg3[%c1_35, %c0_36, %c0_37], %66 {strides = array<i32>} : memref<2x4x256xf32, #tpu.memory_space<vmem>>, vector<1x4x256xf32>,
    return
  }
  func.func @transform_0(%arg0: i32) -> i32 {
    %c0_i32 = arith.constant 0 : i32
    %c0_i32_0 = arith.constant 0 : i32
    return %c0_i32 : i32
  }
  func.func @transform_1(%arg0: i32) -> (i32, i32, i32) {
    %c0_i32 = arith.constant 0 : i32
    %c0_i32_0 = arith.constant 0 : i32
    %c0_i32_1 = arith.constant 0 : i32
    return %arg0, %c0_i32, %c0_i32_0 : i32, i32, i32
  }
  func.func @transform_2(%arg0: i32) -> (i32, i32, i32) {
    %c0_i32 = arith.constant 0 : i32
    %c0_i32_0 = arith.constant 0 : i32
    %c0_i32_1 = arith.constant 0 : i32
    return %arg0, %c0_i32, %c0_i32_0 : i32, i32, i32
  }
}

</mosaic_0001>

<llo_original>
// kernel: tpu_custom_call.1
$region0: #{tpu_custom_call.1}
  #allocation0 [shape = 'u32[]', space=smem, size = 0x4, offset = 0x4, fixed_abs, tag = 'smem constant byte address 0x4 - core index']
  #allocation1 [shape = 'u32[144,128]{1,0:T(1,128)}', space=vmem, size = 0x12000, scoped, tag = 'internal scratch']
  #allocation2 [shape = 'f32[20,1]{1,0:T(8,128)}', space=vmem, size = 0x3000, scoped, tag = 'scratch operand']
  %s0 = inlined_call_operand.hbm [shape: f32[3], index: 0, kind: input, shape index: {}]
  %s1 = inlined_call_operand.hbm [shape: f32[2,4,256], index: 1, kind: input, shape index: {}]
  %s2 = inlined_call_operand.hbm [shape: f32[2,4,256], index: 2, kind: output, shape index: {}]
  %s3 = sld [smem:[#allocation0]]
  $region26: #{tpu_custom_call.1} parent=0
    _
  %s5 = ssub.s32 1, %s3
  %s6 = scalar_select 0, %s5, %s3
  $region1: #{tpu_custom_call.1} parent=0
    #allocation3 [shape = 'u8[512]{0}', space=smem, size = 0x200, scoped, tag = 'input window, operand 0, single buffered']
    #allocation4 [shape = 's32[1]{0}', space=sflag, size = 0x4, scoped, tag = 'scoped memory for tpu_custom_call.1']
    #allocation5 [shape = 's32[1]{0}', space=sflag, size = 0x4, scoped, tag = 'scoped memory for tpu_custom_call.1']
    #allocation6 [shape = 's32[1]{0}', space=sflag, size = 0x4, scoped, tag = 'scoped memory for tpu_custom_call.1']
    #allocation7 [shape = 'u8[8192]{0}', space=vmem, size = 0x2000, scoped, tag = 'input window, operand 1, single buffered']
    #allocation8 [shape = 'u8[8192]{0}', space=vmem, size = 0x2000, scoped, tag = 'output window, operand 0, single buffered']
    %7 = vsyncpa [#allocation6], 0
    %8 = vsyncpa [#allocation4], 0
    %9 = vsyncpa [#allocation5], 0
    // Predicated region
    $region2: #{tpu_custom_call.1} parent=1 // pred_check
      _
    $region3: #{tpu_custom_call.1} parent=1 // pred_check_branch
      %11 = sbr.rel (0) target = $region5
    $region4: #{tpu_custom_call.1} parent=1 // pred_region
      %s13 = ssub.s32 16, 16
      %14 = vsyncadd [#allocation6], %s13
      %17 = dma.hbm_to_smem %s0, 16, [#allocation3], [#allocation6]
    $region5: #{tpu_custom_call.1} parent=1 // pred_fallthru
      _
    // Predicated region
    $region6: #{tpu_custom_call.1} parent=1 // pred_check
      _
    $region7: #{tpu_custom_call.1} parent=1 // pred_check_branch
      %19 = sbr.rel (0) target = $region9
    $region8: #{tpu_custom_call.1} parent=1 // pred_region
      %s21 = ssub.s32 256, 256
      %22 = vsyncadd [#allocation4], %s21
      %s23 = sshll.u32 [#allocation7], 4
      %s24 = int_to_ptr.vmem [resolvable:$true] %s23
      %29 = dma.hbm_to_vmem [thread:$0]  %s1, 256, %s24, [#allocation4], 128, 128, 8
    $region9: #{tpu_custom_call.1} parent=1 // pred_fallthru
      _
    // Predicated region
    $region10: #{tpu_custom_call.1} parent=1 // pred_check
      _
    $region11: #{tpu_custom_call.1} parent=1 // pred_check_branch
      %31 = sbr.rel (0) target = $region13
    $region12: #{tpu_custom_call.1} parent=1 // pred_region
      %32 = dma.done [#allocation6], 16
    $region13: #{tpu_custom_call.1} parent=1 // pred_fallthru
      _
    // Predicated region
    $region14: #{tpu_custom_call.1} parent=1 // pred_check
      _
    $region15: #{tpu_custom_call.1} parent=1 // pred_check_branch
      %34 = sbr.rel (0) target = $region17
    $region16: #{tpu_custom_call.1} parent=1 // pred_region
      %35 = dma.done [#allocation4], 256
    $region17: #{tpu_custom_call.1} parent=1 // pred_fallthru
      _
    %36 = sfence
    %v37 = vld [vmem:[#allocation7] sm:$0xff]
    %v38 = vld [vmem:[#allocation7 + $0x8] sm:$0xff]
    %v41 = vcombine.high %v37, %v37
    %v42 = vcombine.high %v38, %v38
    %vm45 = vcmask 1043456
    %v46 = vsel %vm45, %v37, 0.0
    %v47 = vsel %vm45, %v41, 0.0
    %v48 = vadd.f32 %v46, %v47
    %49 = vadd.xlane.f32.xlu0 %v48
    %v50 = vpop.xlane.xlu0 %49
    %v51 = vsel %vm45, %v38, 0.0
    %v52 = vsel %vm45, %v42, 0.0
    %v53 = vadd.f32 %v51, %v52
    %54 = vadd.xlane.f32.xlu0 %v53
    %v55 = vpop.xlane.xlu0 %54
    %vm56 = vcmask 7168
    %57 = vst.msk [vmem:[#allocation2] sm:$0xff] %vm56, 0.0
    %58 = vst.msk [vmem:[#allocation2 + $0x8] sm:$0xff] %vm56, 0.0
    %vm59 = vcmask 3072
    %60 = vst.msk [vmem:[#allocation2 + $0x10] sm:$0xf] %vm59, 0.0
    %v61 = vmul.f32 %v50, 0.00390625
    %62 = vst.msk [vmem:[#allocation2 + $0x8] sm:$0xf] %vm59, %v61
    %s63 = sld [smem:[#allocation3]]
    %v64 = vld [vmem:[#allocation2 + $0x7] sm:$0xf]
    %v65 = vstv %s63
    %v66 = vmul.f32 %v65, %v64
    %s67 = sld [smem:[#allocation3 + $0x1]]
    %v68 = vld [vmem:[#allocation2 + $0x8] sm:$0xf]
    %v69 = vstv %s67
    %v70 = vmul.f32 %v69, %v68
    %v71 = vadd.f32 %v66, %v70
    %s72 = sld [smem:[#allocation3 + $0x2]]
    %v73 = vld [vmem:[#allocation2 + $0x9] sm:$0xf]
    %v74 = vstv %s72
    %v75 = vmul.f32 %v74, %v73
    %v76 = vadd.f32 %v71, %v75
    %v77 = vxor.u32 %v76, 2147483648
    %v78 = vmul.f32 %v77, 1.442695
    %v79 = vpow.pop %v78
    %v80 = vadd.f32 %v79, 1.0
    %v81 = vrcp.pop %v80
    %v82 = vmul.f32 1.0, %v81
    %v83 = vld [vmem:[#allocation7] sm:$0xff]
    %85 = vset.pattern.permute.xlu0 0
    %86 = vperm.xlu0 %85, %v82
    %v87 = vpop.permute.xlu0 %86
    %v89 = vunpack.c.l.s4 839922192
    %v90 = vunpack.c.0.s8 %v89
    %v91 = vlaneseq
    %v92 = vshrl.u32 %v91, 7
    %v93 = vsub.s32 %v90, %v92
    %v94 = vrot.slane %v87, %v93
    %v96 = vmul.f32 %v83, %v94
    %97 = vst [vmem:[#allocation8] sm:$0xff] %v96
    %v98 = vmul.f32 %v55, 0.00390625
    %99 = vst.msk [vmem:[#allocation2 + $0x8] sm:$0xf] %vm59, %v98
    %s100 = sld [smem:[#allocation3]]
    %v101 = vld [vmem:[#allocation2 + $0x7] sm:$0xf]
    %v102 = vstv %s100
    %v103 = vmul.f32 %v102, %v101
    %s104 = sld [smem:[#allocation3 + $0x1]]
    %v105 = vld [vmem:[#allocation2 + $0x8] sm:$0xf]
    %v106 = vstv %s104
    %v107 = vmul.f32 %v106, %v105
    %v108 = vadd.f32 %v103, %v107
    %s109 = sld [smem:[#allocation3 + $0x2]]
    %v110 = vld [vmem:[#allocation2 + $0x9] sm:$0xf]
    %v111 = vstv %s109
    %v112 = vmul.f32 %v111, %v110
    %v113 = vadd.f32 %v108, %v112
    %v114 = vxor.u32 %v113, 2147483648
    %v115 = vmul.f32 %v114, 1.442695
    %v116 = vpow.pop %v115
    %v117 = vadd.f32 %v116, 1.0
    %v118 = vrcp.pop %v117
    %v119 = vmul.f32 1.0, %v118
    %s120 = scalar_lea.vmem [#allocation7], 8
    %v121 = vld [vmem:[%s120] sm:$0xff]
    %123 = vset.pattern.permute.xlu0 0
    %124 = vperm.xlu0 %123, %v119
    %v125 = vpop.permute.xlu0 %124
    %v127 = vunpack.c.l.s4 839922192
    %v128 = vunpack.c.0.s8 %v127
    %v129 = vlaneseq
    %v130 = vshrl.u32 %v129, 7
    %v131 = vsub.s32 %v128, %v130
    %v132 = vrot.slane %v125, %v131
    %v134 = vmul.f32 %v121, %v132
    %s135 = scalar_lea.vmem [#allocation8], 8
    %136 = vst [vmem:[%s135] sm:$0xff] %v134
    // Predicated region
    $region18: #{tpu_custom_call.1} parent=1 // pred_check
      _
    $region19: #{tpu_custom_call.1} parent=1 // pred_check_branch
      %138 = sbr.rel (0) target = $region21
    $region20: #{tpu_custom_call.1} parent=1 // pred_region
      %s140 = ssub.s32 256, 256
      %141 = vsyncadd [#allocation5], %s140
      %s142 = sshll.u32 [#allocation8], 4
      %s143 = int_to_ptr.vmem [resolvable:$true] %s142
      %148 = dma.vmem_to_hbm [thread:$0]  %s143, 256, %s2, [#allocation5], 128, 128, 8
    $region21: #{tpu_custom_call.1} parent=1 // pred_fallthru
      _
    // Predicated region
    $region22: #{tpu_custom_call.1} parent=1 // pred_check
      _
    $region23: #{tpu_custom_call.1} parent=1 // pred_check_branch
      %150 = sbr.rel (0) target = $region25
    $region24: #{tpu_custom_call.1} parent=1 // pred_region
      %151 = dma.done [#allocation5], 256
    $region25: #{tpu_custom_call.1} parent=1 // pred_fallthru
      _
    %152 = vsyncpa [#allocation4], 1
    %153 = vsyncpa [#allocation5], 1
    %154 = vsyncpa [#allocation6], 1

</llo_original>
